<compile_context>
chip_gen: v6e
topology: v6e:2x2x1
jax: 0.10.0
libtpu: 0.0.40
codegen_flags: <defaults>
</compile_context>

<pallas_src>
import jax
import jax.numpy as jnp
from jax.experimental import pallas as pl
from jax.experimental.pallas import tpu as pltpu  # noqa: F401

LOGITS_PAD = 128  # lane-dense logits slab width


def _full_spec(shape):
    # whole-array block, no grid
    return pl.BlockSpec(shape, lambda: (0,) * len(shape))


def _mxu_dot(x, w):
    # bf16 operands, f32 accumulation on the MXU.
    return jnp.dot(x.astype(jnp.bfloat16), w.astype(jnp.bfloat16),
                   preferred_element_type=jnp.float32)


# ------------------------------ fused kernel -------------------------------
def nli_fused_kernel(table_ref, p_ids_ref, p_len_ref, h_ids_ref, h_len_ref,
                     w_enc_ref, b_enc_ref, w1_ref, b1_ref, w2_ref, b2_ref,
                     out_ref):
    table = table_ref[...]                         # [V, D] f32 (VMEM-resident)
    V, _ = table.shape
    w_enc = w_enc_ref[...]                         # [D, H]
    b_enc = b_enc_ref[...]                         # [1, H]
    H = w_enc.shape[1]

    def encode(ids_ref, len_ref):
        ids = ids_ref[...]                         # [B, S] int32
        B, S = ids.shape
        lens_i = len_ref[...]                      # [B, 1] int32
        lens_f = jnp.maximum(lens_i.astype(jnp.float32), 1.0)   # guard len==0
        inv_len = pl.reciprocal(lens_f, approx=True)             # [B, 1] (EUP)
        seq = jax.lax.broadcasted_iota(jnp.int32, (B, S), 1)     # [B, S]
        # mask folded with 1/len: w[b, s] = 1/len_b if s < len_b else 0
        w = jnp.where(seq < lens_i, inv_len, 0.0)                # [B, S] f32
        # weighted bag-of-words: bow[b, v] = sum_s w[b, s] * [ids[b, s] == v]
        vocab = jax.lax.broadcasted_iota(jnp.int32, (B, S, V), 2)
        onehot = (ids[:, :, None] == vocab).astype(jnp.float32)  # [B, S, V]
        bow = jnp.sum(onehot * w[:, :, None], axis=1)            # [B, V]
        # masked-mean pooled embeddings == bow @ table (gather fused into the MXU)
        pooled = jnp.dot(bow, table, preferred_element_type=jnp.float32)  # [B, D]
        rep = _mxu_dot(pooled, w_enc) + b_enc                    # [B, H]
        return jnp.maximum(rep, 0.0)

    u = encode(p_ids_ref, p_len_ref)               # [B, H]
    v = encode(h_ids_ref, h_len_ref)               # [B, H]

    # classifier layer 1: [u, v, |u-v|, u*v] @ w1 as 4 accumulating dots on static
    # slices of w1 (no 4H-wide concat buffer).
    h = (_mxu_dot(u, w1_ref[0 * H:1 * H, :])
         + _mxu_dot(v, w1_ref[1 * H:2 * H, :])
         + _mxu_dot(jnp.abs(u - v), w1_ref[2 * H:3 * H, :])
         + _mxu_dot(u * v, w1_ref[3 * H:4 * H, :])
         + b1_ref[...])
    h = jnp.maximum(h, 0.0)                        # [B, H2]

    # classifier layer 2: lane-dense padded logits slab (extra lanes are exact zeros)
    out_ref[...] = _mxu_dot(h, w2_ref[...]) + b2_ref[...]        # [B, LOGITS_PAD]


# --------------------------------- wrapper ----------------------------------
def nli_model(params, premise, premise_lengths, hypothesis, hypothesis_lengths):
    """Fused NLIModel forward; returns [B, num_classes] logits."""
    emb_table = params["emb_table"]
    w_enc, b_enc = params["w_enc"], params["b_enc"]
    w1, b1 = params["w1"], params["b1"]
    w2, b2 = params["w2"], params["b2"]

    B, S = premise.shape
    V, D = emb_table.shape
    H = w_enc.shape[1]
    H4, H2 = w1.shape
    C = w2.shape[1]

    # lane-dense logits: zero-pad the last linear layer out to 128 lanes
    w2_pad = jnp.pad(w2, ((0, 0), (0, LOGITS_PAD - C)))
    b2_pad = jnp.pad(b2, ((0, 0), (0, LOGITS_PAD - C)))

    p_len = premise_lengths.astype(jnp.int32).reshape(B, 1)
    h_len = hypothesis_lengths.astype(jnp.int32).reshape(B, 1)

    # TODO(synk): for large batch, add a 'parallel' grid axis over B so v7x's two
    # TensorCores each take half the batch tiles; at B=8 a grid only adds overhead.
    logits_pad = pl.pallas_call(
        nli_fused_kernel,
        out_shape=jax.ShapeDtypeStruct((B, LOGITS_PAD), jnp.float32),
        in_specs=[_full_spec((V, D)),
                  _full_spec((B, S)), _full_spec((B, 1)),
                  _full_spec((B, S)), _full_spec((B, 1)),
                  _full_spec((D, H)), _full_spec((1, H)),
                  _full_spec((H4, H2)), _full_spec((1, H2)),
                  _full_spec((H2, LOGITS_PAD)), _full_spec((1, LOGITS_PAD))],
        out_specs=_full_spec((B, LOGITS_PAD)),
    )(emb_table, premise.astype(jnp.int32), p_len,
      hypothesis.astype(jnp.int32), h_len,
      w_enc, b_enc, w1, b1, w2_pad, b2_pad)

    return logits_pad[:, :C]


if __name__ == "__main__":
    B, S, D, H, H2, C, V = 8, 8, 128, 128, 128, 3, 64

    key = jax.random.PRNGKey(0)
    k_emb, k_we, k_w1, k_w2, k_p, k_h, k_pl, k_hl = jax.random.split(key, 8)

    params = {
        "emb_table": 0.02 * jax.random.normal(k_emb, (V, D), jnp.float32),
        "w_enc": 0.02 * jax.random.normal(k_we, (D, H), jnp.float32),
        "b_enc": jnp.zeros((1, H), jnp.float32),
        "w1": 0.02 * jax.random.normal(k_w1, (4 * H, H2), jnp.float32),
        "b1": jnp.zeros((1, H2), jnp.float32),
        "w2": 0.02 * jax.random.normal(k_w2, (H2, C), jnp.float32),
        "b2": jnp.zeros((1, C), jnp.float32),
    }

    premise = jax.random.randint(k_p, (B, S), 0, V, jnp.int32)
    hypothesis = jax.random.randint(k_h, (B, S), 0, V, jnp.int32)
    premise_lengths = jax.random.randint(k_pl, (B,), 1, S + 1, jnp.int32)
    hypothesis_lengths = jax.random.randint(k_hl, (B,), 1, S + 1, jnp.int32)

    logits = nli_model(params, premise, premise_lengths,
                       hypothesis, hypothesis_lengths)
    jax.block_until_ready(logits)
    assert logits.shape == (B, C)
    print("KERNEL_OK")
</pallas_src>

<mosaic_0001>
module attributes {stable_mosaic.version = 11 : i64} {
  func.func @nli_fused_kernel(%arg0: memref<64x128xf32, #tpu.memory_space<vmem>>, %arg1: memref<8x8xi32, #tpu.memory_space<vmem>>, %arg2: memref<8x1xi32, #tpu.memory_space<vmem>>, %arg3: memref<8x8xi32, #tpu.memory_space<vmem>>, %arg4: memref<8x1xi32, #tpu.memory_space<vmem>>, %arg5: memref<128x128xf32, #tpu.memory_space<vmem>>, %arg6: memref<1x128xf32, #tpu.memory_space<vmem>>, %arg7: memref<512x128xf32, #tpu.memory_space<vmem>>, %arg8: memref<1x128xf32, #tpu.memory_space<vmem>>, %arg9: memref<128x128xf32, #tpu.memory_space<vmem>>, %arg10: memref<1x128xf32, #tpu.memory_space<vmem>>, %arg11: memref<8x128xf32, #tpu.memory_space<vmem>>) attributes {dimension_semantics = [], scalar_prefetch = 0 : i64, scratch_operands = 0 : i64, tpu.core_type = #tpu.core_type<tc>} {
    %c0 = arith.constant 0 : index
    %c0_0 = arith.constant 0 : index
    %0 = vector.load %arg0[%c0, %c0_0] : memref<64x128xf32, #tpu.memory_space<vmem>>, vector<64x128xf32>
    %c0_1 = arith.constant 0 : index
    %c0_2 = arith.constant 0 : index
    %1 = vector.load %arg5[%c0_1, %c0_2] : memref<128x128xf32, #tpu.memory_space<vmem>>, vector<128x128xf32>
    %c0_3 = arith.constant 0 : index
    %c0_4 = arith.constant 0 : index
    %2 = vector.load %arg6[%c0_3, %c0_4] : memref<1x128xf32, #tpu.memory_space<vmem>>, vector<1x128xf32>
    %c0_5 = arith.constant 0 : index
    %c0_6 = arith.constant 0 : index
    %3 = vector.load %arg1[%c0_5, %c0_6] : memref<8x8xi32, #tpu.memory_space<vmem>>, vector<8x8xi32>
    %c0_7 = arith.constant 0 : index
    %c0_8 = arith.constant 0 : index
    %4 = vector.load %arg2[%c0_7, %c0_8] : memref<8x1xi32, #tpu.memory_space<vmem>>, vector<8x1xi32>
    %5 = arith.sitofp %4 : vector<8x1xi32> to vector<8x1xf32>
    %cst = arith.constant 1.000000e+00 : f32
    %6 = vector.broadcast %cst : f32 to vector<8x1xf32>
    %7 = arith.maximumf %5, %6 : vector<8x1xf32>
    %8 = tpu.reciprocal %7 {approx = true} : vector<8x1xf32> -> vector<8x1xf32>
    %9 = tpu.iota {dimensions = array<i32: 1>} : vector<8x8xi32>
    %10 = vector.broadcast %4 : vector<8x1xi32> to vector<8x8xi32>
    %11 = arith.cmpi slt, %9, %10 : vector<8x8xi32>
    %cst_9 = arith.constant 0.000000e+00 : f32
    %12 = vector.shape_cast %8 : vector<8x1xf32> to vector<8x1xf32>
    %13 = vector.broadcast %12 : vector<8x1xf32> to vector<8x8xf32>
    %14 = vector.broadcast %cst_9 : f32 to vector<8x8xf32>
    %15 = arith.select %11, %13, %14 : vector<8x8xi1>, vector<8x8xf32>
    %16 = tpu.iota {dimensions = array<i32: 2>} : vector<8x8x64xi32>
    %17 = vector.shape_cast %3 : vector<8x8xi32> to vector<8x8x1xi32>
    %18 = vector.broadcast %17 : vector<8x8x1xi32> to vector<8x8x64xi32>
    %19 = arith.cmpi eq, %18, %16 : vector<8x8x64xi32>
    %20 = arith.extui %19 : vector<8x8x64xi1> to vector<8x8x64xi32>
    %21 = arith.sitofp %20 : vector<8x8x64xi32> to vector<8x8x64xf32>
    %22 = vector.shape_cast %15 : vector<8x8xf32> to vector<8x8x1xf32>
    %23 = vector.broadcast %22 : vector<8x8x1xf32> to vector<8x8x64xf32>
    %24 = arith.mulf %21, %23 : vector<8x8x64xf32>
    %cst_10 = arith.constant dense<0.000000e+00> : vector<8x64xf32>
    %25 = vector.multi_reduction <add>, %24, %cst_10 [1] : vector<8x8x64xf32> to vector<8x64xf32>
    %cst_11 = arith.constant dense<0.000000e+00> : vector<8x128xf32>
    %26 = tpu.matmul %25, %0, %cst_11 {dimension_numbers = #tpu.dot_dimension_numbers<[1], [0], [0], [1], [0, 0, 1, 1], [], []>} : vector<8x64xf32>, vector<64x128xf32>, vector<8x128xf32> -> vector<8x128xf32>
    %27 = arith.truncf %26 : vector<8x128xf32> to vector<8x128xbf16>
    %28 = arith.truncf %1 : vector<128x128xf32> to vector<128x128xbf16>
    %cst_12 = arith.constant dense<0.000000e+00> : vector<8x128xf32>
    %29 = tpu.matmul %27, %28, %cst_12 {dimension_numbers = #tpu.dot_dimension_numbers<[1], [0], [0], [1], [0, 0, 1, 1], [], []>} : vector<8x128xbf16>, vector<128x128xbf16>, vector<8x128xf32> -> vector<8x128xf32>
    %30 = vector.broadcast %2 : vector<1x128xf32> to vector<8x128xf32>
    %31 = arith.addf %29, %30 : vector<8x128xf32>
    %cst_13 = arith.constant 0.000000e+00 : f32
    %32 = vector.broadcast %cst_13 : f32 to vector<8x128xf32>
    %33 = arith.maximumf %31, %32 : vector<8x128xf32>
    %c0_14 = arith.constant 0 : index
    %c0_15 = arith.constant 0 : index
    %34 = vector.load %arg3[%c0_14, %c0_15] : memref<8x8xi32, #tpu.memory_space<vmem>>, vector<8x8xi32>
    %c0_16 = arith.constant 0 : index
    %c0_17 = arith.constant 0 : index
    %35 = vector.load %arg4[%c0_16, %c0_17] : memref<8x1xi32, #tpu.memory_space<vmem>>, vector<8x1xi32>
    %36 = arith.sitofp %35 : vector<8x1xi32> to vector<8x1xf32>
    %cst_18 = arith.constant 1.000000e+00 : f32
    %37 = vector.broadcast %cst_18 : f32 to vector<8x1xf32>
    %38 = arith.maximumf %36, %37 : vector<8x1xf32>
    %39 = tpu.reciprocal %38 {approx = true} : vector<8x1xf32> -> vector<8x1xf32>
    %40 = tpu.iota {dimensions = array<i32: 1>} : vector<8x8xi32>
    %41 = vector.broadcast %35 : vector<8x1xi32> to vector<8x8xi32>
    %42 = arith.cmpi slt, %40, %41 : vector<8x8xi32>
    %cst_19 = arith.constant 0.000000e+00 : f32
    %43 = vector.shape_cast %39 : vector<8x1xf32> to vector<8x1xf32>
    %44 = vector.broadcast %43 : vector<8x1xf32> to vector<8x8xf32>
    %45 = vector.broadcast %cst_19 : f32 to vector<8x8xf32>
    %46 = arith.select %42, %44, %45 : vector<8x8xi1>, vector<8x8xf32>
    %47 = tpu.iota {dimensions = array<i32: 2>} : vector<8x8x64xi32>
    %48 = vector.shape_cast %34 : vector<8x8xi32> to vector<8x8x1xi32>
    %49 = vector.broadcast %48 : vector<8x8x1xi32> to vector<8x8x64xi32>
    %50 = arith.cmpi eq, %49, %47 : vector<8x8x64xi32>
    %51 = arith.extui %50 : vector<8x8x64xi1> to vector<8x8x64xi32>
    %52 = arith.sitofp %51 : vector<8x8x64xi32> to vector<8x8x64xf32>
    %53 = vector.shape_cast %46 : vector<8x8xf32> to vector<8x8x1xf32>
    %54 = vector.broadcast %53 : vector<8x8x1xf32> to vector<8x8x64xf32>
    %55 = arith.mulf %52, %54 : vector<8x8x64xf32>
    %cst_20 = arith.constant dense<0.000000e+00> : vector<8x64xf32>
    %56 = vector.multi_reduction <add>, %55, %cst_20 [1] : vector<8x8x64xf32> to vector<8x64xf32>
    %cst_21 = arith.constant dense<0.000000e+00> : vector<8x128xf32>
    %57 = tpu.matmul %56, %0, %cst_21 {dimension_numbers = #tpu.dot_dimension_numbers<[1], [0], [0], [1], [0, 0, 1, 1], [], []>} : vector<8x64xf32>, vector<64x128xf32>, vector<8x128xf32> -> vector<8x128xf32>
    %58 = arith.truncf %57 : vector<8x128xf32> to vector<8x128xbf16>
    %59 = arith.truncf %1 : vector<128x128xf32> to vector<128x128xbf16>
    %cst_22 = arith.constant dense<0.000000e+00> : vector<8x128xf32>
    %60 = tpu.matmul %58, %59, %cst_22 {dimension_numbers = #tpu.dot_dimension_numbers<[1], [0], [0], [1], [0, 0, 1, 1], [], []>} : vector<8x128xbf16>, vector<128x128xbf16>, vector<8x128xf32> -> vector<8x128xf32>
    %61 = vector.broadcast %2 : vector<1x128xf32> to vector<8x128xf32>
    %62 = arith.addf %60, %61 : vector<8x128xf32>
    %cst_23 = arith.constant 0.000000e+00 : f32
    %63 = vector.broadcast %cst_23 : f32 to vector<8x128xf32>
    %64 = arith.maximumf %62, %63 : vector<8x128xf32>
    %c0_24 = arith.constant 0 : index
    %c0_25 = arith.constant 0 : index
    %65 = vector.load %arg7[%c0_24, %c0_25] : memref<512x128xf32, #tpu.memory_space<vmem>>, vector<128x128xf32>
    %66 = arith.truncf %33 : vector<8x128xf32> to vector<8x128xbf16>
    %67 = arith.truncf %65 : vector<128x128xf32> to vector<128x128xbf16>
    %cst_26 = arith.constant dense<0.000000e+00> : vector<8x128xf32>
    %68 = tpu.matmul %66, %67, %cst_26 {dimension_numbers = #tpu.dot_dimension_numbers<[1], [0], [0], [1], [0, 0, 1, 1], [], []>} : vector<8x128xbf16>, vector<128x128xbf16>, vector<8x128xf32> -> vector<8x128xf32>
    %c128 = arith.constant 128 : index
    %c0_27 = arith.constant 0 : index
    %69 = vector.load %arg7[%c128, %c0_27] : memref<512x128xf32, #tpu.memory_space<vmem>>, vector<128x128xf32>
    %70 = arith.truncf %64 : vector<8x128xf32> to vector<8x128xbf16>
    %71 = arith.truncf %69 : vector<128x128xf32> to vector<128x128xbf16>
    %cst_28 = arith.constant dense<0.000000e+00> : vector<8x128xf32>
    %72 = tpu.matmul %70, %71, %cst_28 {dimension_numbers = #tpu.dot_dimension_numbers<[1], [0], [0], [1], [0, 0, 1, 1], [], []>} : vector<8x128xbf16>, vector<128x128xbf16>, vector<8x128xf32> -> vector<8x128xf32>
    %73 = arith.addf %68, %72 : vector<8x128xf32>
    %74 = arith.subf %33, %64 : vector<8x128xf32>
    %75 = math.absf %74 : vector<8x128xf32>
    %c256 = arith.constant 256 : index
    %c0_29 = arith.constant 0 : index
    %76 = vector.load %arg7[%c256, %c0_29] : memref<512x128xf32, #tpu.memory_space<vmem>>, vector<128x128xf32>
    %77 = arith.truncf %75 : vector<8x128xf32> to vector<8x128xbf16>
    %78 = arith.truncf %76 : vector<128x128xf32> to vector<128x128xbf16>
    %cst_30 = arith.constant dense<0.000000e+00> : vector<8x128xf32>
    %79 = tpu.matmul %77, %78, %cst_30 {dimension_numbers = #tpu.dot_dimension_numbers<[1], [0], [0], [1], [0, 0, 1, 1], [], []>} : vector<8x128xbf16>, vector<128x128xbf16>, vector<8x128xf32> -> vector<8x128xf32>
    %80 = arith.addf %73, %79 : vector<8x128xf32>
    %81 = arith.mulf %33, %64 : vector<8x128xf32>
    %c384 = arith.constant 384 : index
    %c0_31 = arith.constant 0 : index
    %82 = vector.load %arg7[%c384, %c0_31] : memref<512x128xf32, #tpu.memory_space<vmem>>, vector<128x128xf32>
    %83 = arith.truncf %81 : vector<8x128xf32> to vector<8x128xbf16>
    %84 = arith.truncf %82 : vector<128x128xf32> to vector<128x128xbf16>
    %cst_32 = arith.constant dense<0.000000e+00> : vector<8x128xf32>
    %85 = tpu.matmul %83, %84, %cst_32 {dimension_numbers = #tpu.dot_dimension_numbers<[1], [0], [0], [1], [0, 0, 1, 1], [], []>} : vector<8x128xbf16>, vector<128x128xbf16>, vector<8x128xf32> -> vector<8x128xf32>
    %86 = arith.addf %80, %85 : vector<8x128xf32>
    %c0_33 = arith.constant 0 : index
    %c0_34 = arith.constant 0 : index
    %87 = vector.load %arg8[%c0_33, %c0_34] : memref<1x128xf32, #tpu.memory_space<vmem>>, vector<1x128xf32>
    %88 = vector.broadcast %87 : vector<1x128xf32> to vector<8x128xf32>
    %89 = arith.addf %86, %88 : vector<8x128xf32>
    %cst_35 = arith.constant 0.000000e+00 : f32
    %90 = vector.broadcast %cst_35 : f32 to vector<8x128xf32>
    %91 = arith.maximumf %89, %90 : vector<8x128xf32>
    %c0_36 = arith.constant 0 : index
    %c0_37 = arith.constant 0 : index
    %92 = vector.load %arg9[%c0_36, %c0_37] : memref<128x128xf32, #tpu.memory_space<vmem>>, vector<128x128xf32>
    %93 = arith.truncf %91 : vector<8x128xf32> to vector<8x128xbf16>
    %94 = arith.truncf %92 : vector<128x128xf32> to vector<128x128xbf16>
    %cst_38 = arith.constant dense<0.000000e+00> : vector<8x128xf32>
    %95 = tpu.matmul %93, %94, %cst_38 {dimension_numbers = #tpu.dot_dimension_numbers<[1], [0], [0], [1], [0, 0, 1, 1], [], []>} : vector<8x128xbf16>, vector<128x128xbf16>, vector<8x128xf32> -> vector<8x128xf32>
    %c0_39 = arith.constant 0 : index
    %c0_40 = arith.constant 0 : index
    %96 = vector.load %arg10[%c0_39, %c0_40] : memref<1x128xf32, #tpu.memory_space<vmem>>, vector<1x128xf32>
    %97 = vector.broadcast %96 : vector<1x128xf32> to vector<8x128xf32>
    %98 = arith.addf %95, %97 : vector<8x128xf32>
    %c0_41 = arith.constant 0 : index
    %c0_42 = arith.constant 0 : index
    %99 = vector.load %arg11[%c0_41, %c0_42] : memref<8x128xf32, #tpu.memory_space<vmem>>, vector<8x128xf32>
    tpu.vector_store %arg11[%c0_41, %c0_42], %98 {strides = array<i32>} : memref<8x128xf32, #tpu.memory_space<vmem>>, vector<8x128xf32>,
    return
  }
}

</mosaic_0001>

<llo_original>
// kernel: tpu_custom_call.1
$region0: #{tpu_custom_call.1}
  #allocation0 [shape = 'u32[]', space=smem, size = 0x4, offset = 0x4, fixed_abs, tag = 'smem constant byte address 0x4 - core index']
  #allocation1 [shape = 'u32[144,128]{1,0:T(1,128)}', space=vmem, size = 0x12000, scoped, tag = 'internal scratch']
  %s0 = inlined_call_operand.hbm [shape: f32[64,128], index: 0, kind: input, shape index: {}]
  %s1 = inlined_call_operand.vmem [shape: s32[8,8], index: 1, kind: input, shape index: {}]
  %s2 = inlined_call_operand.vmem [shape: s32[8,1], index: 2, kind: input, shape index: {}]
  %s3 = inlined_call_operand.vmem [shape: s32[8,8], index: 3, kind: input, shape index: {}]
  %s4 = inlined_call_operand.vmem [shape: s32[8,1], index: 4, kind: input, shape index: {}]
  %s5 = inlined_call_operand.hbm [shape: f32[128,128], index: 5, kind: input, shape index: {}]
  %s6 = inlined_call_operand.vmem [shape: f32[1,128], index: 6, kind: input, shape index: {}]
  %s7 = inlined_call_operand.hbm [shape: f32[512,128], index: 7, kind: input, shape index: {}]
  %s8 = inlined_call_operand.vmem [shape: f32[1,128], index: 8, kind: input, shape index: {}]
  %s9 = inlined_call_operand.hbm [shape: f32[128,128], index: 9, kind: input, shape index: {}]
  %s10 = inlined_call_operand.vmem [shape: f32[1,128], index: 10, kind: input, shape index: {}]
  %s11 = inlined_call_operand.hbm [shape: f32[8,128], index: 11, kind: output, shape index: {}]
  %s12 = sld [smem:[#allocation0]]
  $region70: #{tpu_custom_call.1} parent=0
    _
  %s14 = ssub.s32 1, %s12
  %s15 = scalar_select 0, %s14, %s12
  $region1: #{tpu_custom_call.1} parent=0
    #allocation2 [shape = 'u8[32768]{0}', space=vmem, size = 0x8000, scoped, tag = 'input window, operand 0, single buffered']
    #allocation3 [shape = 's32[1]{0}', space=sflag, size = 0x4, scoped, tag = 'scoped memory for tpu_custom_call.1']
    #allocation4 [shape = 's32[1]{0}', space=sflag, size = 0x4, scoped, tag = 'scoped memory for tpu_custom_call.1']
    #allocation5 [shape = 'u8[65536]{0}', space=vmem, size = 0x10000, scoped, tag = 'input window, operand 5, single buffered']
    #allocation6 [shape = 's32[1]{0}', space=sflag, size = 0x4, scoped, tag = 'scoped memory for tpu_custom_call.1']
    #allocation7 [shape = 'u8[262144]{0}', space=vmem, size = 0x40000, scoped, tag = 'input window, operand 7, single buffered']
    #allocation8 [shape = 'u8[65536]{0}', space=vmem, size = 0x10000, scoped, tag = 'input window, operand 9, single buffered']
    #allocation9 [shape = 's32[1]{0}', space=sflag, size = 0x4, scoped, tag = 'scoped memory for tpu_custom_call.1']
    #allocation10 [shape = 'u8[4096]{0}', space=vmem, size = 0x1000, scoped, tag = 'output window, operand 0, single buffered']
    %16 = vsyncpa [#allocation3], 0
    %17 = vsyncpa [#allocation6], 0
    %18 = vsyncpa [#allocation9], 0
    %19 = vsyncpa [#allocation4], 0
    // Predicated region
    $region2: #{tpu_custom_call.1} parent=1 // pred_check
      _
    $region3: #{tpu_custom_call.1} parent=1 // pred_check_branch
      %21 = sbr.rel (0) target = $region5
    $region4: #{tpu_custom_call.1} parent=1 // pred_region
      %s23 = ssub.s32 1024, 1024
      %24 = vsyncadd [#allocation3], %s23
      %s25 = sshll.u32 [#allocation2], 4
      %s26 = int_to_ptr.vmem [resolvable:$true] %s25
      %31 = dma.hbm_to_vmem [thread:$0]  %s0, 1024, %s26, [#allocation3], 128, 128, 8
    $region5: #{tpu_custom_call.1} parent=1 // pred_fallthru
      _
    // Predicated region
    $region6: #{tpu_custom_call.1} parent=1 // pred_check
      _
    $region7: #{tpu_custom_call.1} parent=1 // pred_check_branch
      %33 = sbr.rel (0) target = $region9
    $region8: #{tpu_custom_call.1} parent=1 // pred_region
      _
    $region9: #{tpu_custom_call.1} parent=1 // pred_fallthru
      _
    // Predicated region
    $region10: #{tpu_custom_call.1} parent=1 // pred_check
      _
    $region11: #{tpu_custom_call.1} parent=1 // pred_check_branch
      %35 = sbr.rel (0) target = $region13
    $region12: #{tpu_custom_call.1} parent=1 // pred_region
      _
    $region13: #{tpu_custom_call.1} parent=1 // pred_fallthru
      _
    // Predicated region
    $region14: #{tpu_custom_call.1} parent=1 // pred_check
      _
    $region15: #{tpu_custom_call.1} parent=1 // pred_check_branch
      %37 = sbr.rel (0) target = $region17
    $region16: #{tpu_custom_call.1} parent=1 // pred_region
      _
    $region17: #{tpu_custom_call.1} parent=1 // pred_fallthru
      _
    // Predicated region
    $region18: #{tpu_custom_call.1} parent=1 // pred_check
      _
    $region19: #{tpu_custom_call.1} parent=1 // pred_check_branch
      %39 = sbr.rel (0) target = $region21
    $region20: #{tpu_custom_call.1} parent=1 // pred_region
      _
    $region21: #{tpu_custom_call.1} parent=1 // pred_fallthru
      _
    // Predicated region
    $region22: #{tpu_custom_call.1} parent=1 // pred_check
      _
    $region23: #{tpu_custom_call.1} parent=1 // pred_check_branch
      %41 = sbr.rel (0) target = $region25
    $region24: #{tpu_custom_call.1} parent=1 // pred_region
      %s43 = ssub.s32 2048, 2048
      %44 = vsyncadd [#allocation6], %s43
      %s45 = sshll.u32 [#allocation5], 4
      %s46 = int_to_ptr.vmem [resolvable:$true] %s45
      %51 = dma.hbm_to_vmem [thread:$0]  %s5, 2048, %s46, [#allocation6], 128, 128, 8
    $region25: #{tpu_custom_call.1} parent=1 // pred_fallthru
      _
    // Predicated region
    $region26: #{tpu_custom_call.1} parent=1 // pred_check
      _
    $region27: #{tpu_custom_call.1} parent=1 // pred_check_branch
      %53 = sbr.rel (0) target = $region29
    $region28: #{tpu_custom_call.1} parent=1 // pred_region
      _
    $region29: #{tpu_custom_call.1} parent=1 // pred_fallthru
      _
    // Predicated region
    $region30: #{tpu_custom_call.1} parent=1 // pred_check
      _
    $region31: #{tpu_custom_call.1} parent=1 // pred_check_branch
      %55 = sbr.rel (0) target = $region33
    $region32: #{tpu_custom_call.1} parent=1 // pred_region
      %s57 = ssub.s32 8192, 8192
      %58 = vsyncadd [#allocation6], %s57
      %s59 = sshll.u32 [#allocation7], 4
      %s60 = int_to_ptr.vmem [resolvable:$true] %s59
      %65 = dma.hbm_to_vmem [thread:$0]  %s7, 8192, %s60, [#allocation6], 128, 128, 8
    $region33: #{tpu_custom_call.1} parent=1 // pred_fallthru
      _
    // Predicated region
    $region34: #{tpu_custom_call.1} parent=1 // pred_check
      _
    $region35: #{tpu_custom_call.1} parent=1 // pred_check_branch
      %67 = sbr.rel (0) target = $region37
    $region36: #{tpu_custom_call.1} parent=1 // pred_region
      _
    $region37: #{tpu_custom_call.1} parent=1 // pred_fallthru
      _
    // Predicated region
    $region38: #{tpu_custom_call.1} parent=1 // pred_check
      _
    $region39: #{tpu_custom_call.1} parent=1 // pred_check_branch
      %69 = sbr.rel (0) target = $region41
    $region40: #{tpu_custom_call.1} parent=1 // pred_region
      %s71 = ssub.s32 2048, 2048
      %72 = vsyncadd [#allocation9], %s71
      %s73 = sshll.u32 [#allocation8], 4
      %s74 = int_to_ptr.vmem [resolvable:$true] %s73
      %79 = dma.hbm_to_vmem [thread:$0]  %s9, 2048, %s74, [#allocation9], 128, 128, 8
    $region41: #{tpu_custom_call.1} parent=1 // pred_fallthru
      _
    // Predicated region
    $region42: #{tpu_custom_call.1} parent=1 // pred_check
      _
    $region43: #{tpu_custom_call.1} parent=1 // pred_check_branch
      %81 = sbr.rel (0) target = $region45
    $region44: #{tpu_custom_call.1} parent=1 // pred_region
      _
    $region45: #{tpu_custom_call.1} parent=1 // pred_fallthru
      _
    // Predicated region
    $region46: #{tpu_custom_call.1} parent=1 // pred_check
      _
    $region47: #{tpu_custom_call.1} parent=1 // pred_check_branch
      %83 = sbr.rel (0) target = $region49
    $region48: #{tpu_custom_call.1} parent=1 // pred_region
      %84 = dma.done [#allocation3], 1024
    $region49: #{tpu_custom_call.1} parent=1 // pred_fallthru
      _
    // Predicated region
    $region50: #{tpu_custom_call.1} parent=1 // pred_check
      _
    $region51: #{tpu_custom_call.1} parent=1 // pred_check_branch
      %86 = sbr.rel (0) target = $region53
    $region52: #{tpu_custom_call.1} parent=1 // pred_region
      %87 = dma.done [#allocation6], 2048
    $region53: #{tpu_custom_call.1} parent=1 // pred_fallthru
      _
    // Predicated region
    $region54: #{tpu_custom_call.1} parent=1 // pred_check
      _
    $region55: #{tpu_custom_call.1} parent=1 // pred_check_branch
      %89 = sbr.rel (0) target = $region57
    $region56: #{tpu_custom_call.1} parent=1 // pred_region
      %90 = dma.done [#allocation6], 8192
    $region57: #{tpu_custom_call.1} parent=1 // pred_fallthru
      _
    // Predicated region
    $region58: #{tpu_custom_call.1} parent=1 // pred_check
      _
    $region59: #{tpu_custom_call.1} parent=1 // pred_check_branch
      %92 = sbr.rel (0) target = $region61
    $region60: #{tpu_custom_call.1} parent=1 // pred_region
      %93 = dma.done [#allocation9], 2048
    $region61: #{tpu_custom_call.1} parent=1 // pred_fallthru
      _
    %v95 = vld [vmem:[#allocation2] sm:$0xff]
    %v96 = vld [vmem:[#allocation2 + $0x8] sm:$0xff]
    %v97 = vld [vmem:[#allocation2 + $0x10] sm:$0xff]
    %v98 = vld [vmem:[#allocation2 + $0x18] sm:$0xff]
    %v99 = vld [vmem:[#allocation2 + $0x20] sm:$0xff]
    %v100 = vld [vmem:[#allocation2 + $0x28] sm:$0xff]
    %v101 = vld [vmem:[#allocation2 + $0x30] sm:$0xff]
    %v102 = vld [vmem:[#allocation2 + $0x38] sm:$0xff]
    %v103 = vld [vmem:[#allocation5] sm:$0xff]
    %v104 = vld [vmem:[#allocation5 + $0x8] sm:$0xff]
    %v105 = vld [vmem:[#allocation5 + $0x10] sm:$0xff]
    %v106 = vld [vmem:[#allocation5 + $0x18] sm:$0xff]
    %v107 = vld [vmem:[#allocation5 + $0x20] sm:$0xff]
    %v108 = vld [vmem:[#allocation5 + $0x28] sm:$0xff]
    %v109 = vld [vmem:[#allocation5 + $0x30] sm:$0xff]
    %v110 = vld [vmem:[#allocation5 + $0x38] sm:$0xff]
    %v111 = vld [vmem:[#allocation5 + $0x40] sm:$0xff]
    %v112 = vld [vmem:[#allocation5 + $0x48] sm:$0xff]
    %v113 = vld [vmem:[#allocation5 + $0x50] sm:$0xff]
    %v114 = vld [vmem:[#allocation5 + $0x58] sm:$0xff]
    %v115 = vld [vmem:[#allocation5 + $0x60] sm:$0xff]
    %v116 = vld [vmem:[#allocation5 + $0x68] sm:$0xff]
    %v117 = vld [vmem:[#allocation5 + $0x70] sm:$0xff]
    %v118 = vld [vmem:[#allocation5 + $0x78] sm:$0xff]
    %v119 = vld [vmem:[%s6] sm:$0x1]
    %v120 = vld [vmem:[%s1] sm:$0xff]
    %v121 = vld [vmem:[%s2] sm:$0xff]
    %v122 = vcvt.s32.f32 %v121
    %v123 = vmax.f32 %v122, 1.0
    %v124 = vrcp.pop %v123
    %v125 = vlaneseq
    %v126 = vand.u32 %v125, 127
    %127 = vset.pattern.permute.xlu0 0
    %128 = vperm.xlu0 %127, %v121
    %v129 = vpop.permute.xlu0 %128
    %vm130 = vcmp.lt.s32.totalorder %v126, %v129
    %132 = vset.pattern.permute.xlu0 0
    %133 = vperm.xlu0 %132, %v124
    %v134 = vpop.permute.xlu0 %133
    %v136 = vsel %vm130, %v134, 0.0
    %v137 = vlaneseq
    %v138 = vshrl.u32 %v137, 7
    %v139 = vsub.s32 0, %v138
    %v140 = vrot.slane %v120, %v139
    %142 = vbcast.lane.b32.xlu0 %v140, 256
    %v143 = vpop.permute.xlu0 %142
    %v144 = vlaneseq
    %v145 = vshrl.u32 %v144, 7
    %v146 = vsub.s32 1, %v145
    %v147 = vrot.slane %v120, %v146
    %149 = vbcast.lane.b32.xlu0 %v147, 256
    %v150 = vpop.permute.xlu0 %149
    %v151 = vlaneseq
    %v152 = vshrl.u32 %v151, 7
    %v153 = vsub.s32 2, %v152
    %v154 = vrot.slane %v120, %v153
    %156 = vbcast.lane.b32.xlu0 %v154, 256
    %v157 = vpop.permute.xlu0 %156
    %v158 = vlaneseq
    %v159 = vshrl.u32 %v158, 7
    %v160 = vsub.s32 3, %v159
    %v161 = vrot.slane %v120, %v160
    %163 = vbcast.lane.b32.xlu0 %v161, 256
    %v164 = vpop.permute.xlu0 %163
    %v165 = vlaneseq
    %v166 = vshrl.u32 %v165, 7
    %v167 = vsub.s32 4, %v166
    %v168 = vrot.slane %v120, %v167
    %170 = vbcast.lane.b32.xlu0 %v168, 256
    %v171 = vpop.permute.xlu0 %170
    %v172 = vlaneseq
    %v173 = vshrl.u32 %v172, 7
    %v174 = vsub.s32 5, %v173
    %v175 = vrot.slane %v120, %v174
    %177 = vbcast.lane.b32.xlu0 %v175, 256
    %v178 = vpop.permute.xlu0 %177
    %v179 = vlaneseq
    %v180 = vshrl.u32 %v179, 7
    %v181 = vsub.s32 6, %v180
    %v182 = vrot.slane %v120, %v181
    %184 = vbcast.lane.b32.xlu0 %v182, 256
    %v185 = vpop.permute.xlu0 %184
    %v186 = vlaneseq
    %v187 = vshrl.u32 %v186, 7
    %v188 = vsub.s32 7, %v187
    %v189 = vrot.slane %v120, %v188
    %191 = vbcast.lane.b32.xlu0 %v189, 256
    %v192 = vpop.permute.xlu0 %191
    %vm193 = vcmp.eq.s32.totalorder %v143, %v126
    %vm194 = vcmp.eq.s32.totalorder %v150, %v126
    %vm195 = vcmp.eq.s32.totalorder %v157, %v126
    %vm196 = vcmp.eq.s32.totalorder %v164, %v126
    %vm197 = vcmp.eq.s32.totalorder %v171, %v126
    %vm198 = vcmp.eq.s32.totalorder %v178, %v126
    %vm199 = vcmp.eq.s32.totalorder %v185, %v126
    %vm200 = vcmp.eq.s32.totalorder %v192, %v126
    %v201 = vsel %vm193, 1, 0
    %v202 = vsel %vm194, 1, 0
    %v203 = vsel %vm195, 1, 0
    %v204 = vsel %vm196, 1, 0
    %v205 = vsel %vm197, 1, 0
    %v206 = vsel %vm198, 1, 0
    %v207 = vsel %vm199, 1, 0
    %v208 = vsel %vm200, 1, 0
    %v209 = vcvt.s32.f32 %v201
    %v210 = vcvt.s32.f32 %v202
    %v211 = vcvt.s32.f32 %v203
    %v212 = vcvt.s32.f32 %v204
    %v213 = vcvt.s32.f32 %v205
    %v214 = vcvt.s32.f32 %v206
    %v215 = vcvt.s32.f32 %v207
    %v216 = vcvt.s32.f32 %v208
    %v217 = vlaneseq
    %v218 = vshrl.u32 %v217, 7
    %v219 = vsub.s32 0, %v218
    %v220 = vrot.slane %v136, %v219
    %222 = vbcast.lane.b32.xlu0 %v220, 256
    %v223 = vpop.permute.xlu0 %222
    %v224 = vlaneseq
    %v225 = vshrl.u32 %v224, 7
    %v226 = vsub.s32 1, %v225
    %v227 = vrot.slane %v136, %v226
    %229 = vbcast.lane.b32.xlu0 %v227, 256
    %v230 = vpop.permute.xlu0 %229
    %v231 = vlaneseq
    %v232 = vshrl.u32 %v231, 7
    %v233 = vsub.s32 2, %v232
    %v234 = vrot.slane %v136, %v233
    %236 = vbcast.lane.b32.xlu0 %v234, 256
    %v237 = vpop.permute.xlu0 %236
    %v238 = vlaneseq
    %v239 = vshrl.u32 %v238, 7
    %v240 = vsub.s32 3, %v239
    %v241 = vrot.slane %v136, %v240
    %243 = vbcast.lane.b32.xlu0 %v241, 256
    %v244 = vpop.permute.xlu0 %243
    %v245 = vlaneseq
    %v246 = vshrl.u32 %v245, 7
    %v247 = vsub.s32 4, %v246
    %v248 = vrot.slane %v136, %v247
    %250 = vbcast.lane.b32.xlu0 %v248, 256
    %v251 = vpop.permute.xlu0 %250
    %v252 = vlaneseq
    %v253 = vshrl.u32 %v252, 7
    %v254 = vsub.s32 5, %v253
    %v255 = vrot.slane %v136, %v254
    %257 = vbcast.lane.b32.xlu0 %v255, 256
    %v258 = vpop.permute.xlu0 %257
    %v259 = vlaneseq
    %v260 = vshrl.u32 %v259, 7
    %v261 = vsub.s32 6, %v260
    %v262 = vrot.slane %v136, %v261
    %264 = vbcast.lane.b32.xlu0 %v262, 256
    %v265 = vpop.permute.xlu0 %264
    %v266 = vlaneseq
    %v267 = vshrl.u32 %v266, 7
    %v268 = vsub.s32 7, %v267
    %v269 = vrot.slane %v136, %v268
    %271 = vbcast.lane.b32.xlu0 %v269, 256
    %v272 = vpop.permute.xlu0 %271
    %v273 = vmul.f32 %v209, %v223
    %v274 = vmul.f32 %v210, %v230
    %v275 = vmul.f32 %v211, %v237
    %v276 = vmul.f32 %v212, %v244
    %v277 = vmul.f32 %v213, %v251
    %v278 = vmul.f32 %v214, %v258
    %v279 = vmul.f32 %v215, %v265
    %v280 = vmul.f32 %v216, %v272
    %vm281 = vcmask 523264
    %v282 = vsel %vm281, %v273, 0.0
    %v283 = vrot.slane %v282, 4
    %v284 = vadd.f32 %v282, %v283
    %v285 = vrot.slane %v284, 2
    %v286 = vadd.f32 %v284, %v285
    %v287 = vrot.slane %v286, 1
    %v288 = vadd.f32 %v286, %v287
    %v289 = vsel %vm281, %v274, 0.0
    %v290 = vrot.slane %v289, 4
    %v291 = vadd.f32 %v289, %v290
    %v292 = vrot.slane %v291, 2
    %v293 = vadd.f32 %v291, %v292
    %v294 = vrot.slane %v293, 1
    %v295 = vadd.f32 %v293, %v294
    %v296 = vsel %vm281, %v275, 0.0
    %v297 = vrot.slane %v296, 4
    %v298 = vadd.f32 %v296, %v297
    %v299 = vrot.slane %v298, 2
    %v300 = vadd.f32 %v298, %v299
    %v301 = vrot.slane %v300, 1
    %v302 = vadd.f32 %v300, %v301
    %v303 = vsel %vm281, %v276, 0.0
    %v304 = vrot.slane %v303, 4
    %v305 = vadd.f32 %v303, %v304
    %v306 = vrot.slane %v305, 2
    %v307 = vadd.f32 %v305, %v306
    %v308 = vrot.slane %v307, 1
    %v309 = vadd.f32 %v307, %v308
    %v310 = vsel %vm281, %v277, 0.0
    %v311 = vrot.slane %v310, 4
    %v312 = vadd.f32 %v310, %v311
    %v313 = vrot.slane %v312, 2
    %v314 = vadd.f32 %v312, %v313
    %v315 = vrot.slane %v314, 1
    %v316 = vadd.f32 %v314, %v315
    %v317 = vsel %vm281, %v278, 0.0
    %v318 = vrot.slane %v317, 4
    %v319 = vadd.f32 %v317, %v318
    %v320 = vrot.slane %v319, 2
    %v321 = vadd.f32 %v319, %v320
    %v322 = vrot.slane %v321, 1
    %v323 = vadd.f32 %v321, %v322
    %v324 = vsel %vm281, %v279, 0.0
    %v325 = vrot.slane %v324, 4
    %v326 = vadd.f32 %v324, %v325
    %v327 = vrot.slane %v326, 2
    %v328 = vadd.f32 %v326, %v327
    %v329 = vrot.slane %v328, 1
    %v330 = vadd.f32 %v328, %v329
    %v331 = vsel %vm281, %v280, 0.0
    %v332 = vrot.slane %v331, 4
    %v333 = vadd.f32 %v331, %v332
    %v334 = vrot.slane %v333, 2
    %v335 = vadd.f32 %v333, %v334
    %v336 = vrot.slane %v335, 1
    %v337 = vadd.f32 %v335, %v336
    %vm346 = vcmask 1041409
    %v347 = vsel %vm346, %v295, %v288
    %vm348 = vcmask 1042434
    %v349 = vsel %vm348, %v302, %v347
    %vm350 = vcmask 1043459
    %v351 = vsel %vm350, %v309, %v349
    %vm352 = vcmask 1044484
    %v353 = vsel %vm352, %v316, %v351
    %vm354 = vcmask 1045509
    %v355 = vsel %vm354, %v323, %v353
    %vm356 = vcmask 1046534
    %v357 = vsel %vm356, %v330, %v355
    %vm358 = vcmask 1047559
    %v359 = vsel %vm358, %v337, %v357
    %v360 = vsel %vm281, %v359, 0
    %362 = vmatprep.subr.mxu0 0.0
    %363 = vmatpush1.msra.mxu0 0.0
    %364 = vmatprep.subr.mxu0 0.0
    %365 = vmatpush1.msra.mxu0 0.0
    %366 = vmatprep.subr.mxu0 0.0
    %367 = vmatpush1.msra.mxu0 0.0
    %368 = vmatprep.subr.mxu0 0.0
    %369 = vmatpush1.msra.mxu0 0.0
    %370 = vmatprep.subr.mxu0 0.0
    %371 = vmatpush1.msra.mxu0 0.0
    %372 = vmatprep.subr.mxu0 0.0
    %373 = vmatpush1.msra.mxu0 0.0
    %374 = vmatprep.subr.mxu0 0.0
    %375 = vmatpush1.msra.mxu0 0.0
    %376 = vmatprep.subr.mxu0 0.0
    %377 = vmatpush1.msra.mxu0 0.0
    %378 = vmatprep.subr.mxu0 0.0
    %379 = vmatpush1.msra.mxu0 %v102
    %380 = vmatprep.subr.mxu0 0.0
    %381 = vmatpush1.msra.mxu0 %v101
    %382 = vmatprep.subr.mxu0 0.0
    %383 = vmatpush1.msra.mxu0 %v100
    %384 = vmatprep.subr.mxu0 0.0
    %385 = vmatpush1.msra.mxu0 %v99
    %386 = vmatprep.subr.mxu0 0.0
    %387 = vmatpush1.msra.mxu0 %v98
    %388 = vmatprep.subr.mxu0 0.0
    %389 = vmatpush1.msra.mxu0 %v97
    %390 = vmatprep.subr.mxu0 0.0
    %391 = vmatpush1.msra.mxu0 %v96
    %392 = vmatprep.subr.mxu0 0.0
    %393 = vmatpush1.msra.mxu0 %v95
    %394 = vmatprep.subr.mxu0 0.0
    %395 = vmatpush2.msra.mxu0 0.0
    %396 = vmatprep.subr.mxu0 0.0
    %397 = vmatpush2.msra.mxu0 0.0
    %398 = vmatprep.subr.mxu0 0.0
    %399 = vmatpush2.msra.mxu0 0.0
    %400 = vmatprep.subr.mxu0 0.0
    %401 = vmatpush2.msra.mxu0 0.0
    %402 = vmatprep.subr.mxu0 0.0
    %403 = vmatpush2.msra.mxu0 0.0
    %404 = vmatprep.subr.mxu0 0.0
    %405 = vmatpush2.msra.mxu0 0.0
    %406 = vmatprep.subr.mxu0 0.0
    %407 = vmatpush2.msra.mxu0 0.0
    %408 = vmatprep.subr.mxu0 0.0
    %409 = vmatpush2.msra.mxu0 0.0
    %410 = vmatprep.subr.mxu0 0.0
    %411 = vmatpush2.msra.mxu0 0.0
    %412 = vmatprep.subr.mxu0 0.0
    %413 = vmatpush2.msra.mxu0 0.0
    %414 = vmatprep.subr.mxu0 0.0
    %415 = vmatpush2.msra.mxu0 0.0
    %416 = vmatprep.subr.mxu0 0.0
    %417 = vmatpush2.msra.mxu0 0.0
    %418 = vmatprep.subr.mxu0 0.0
    %419 = vmatpush2.msra.mxu0 0.0
    %420 = vmatprep.subr.mxu0 0.0
    %421 = vmatpush2.msra.mxu0 0.0
    %422 = vmatprep.subr.mxu0 0.0
    %423 = vmatpush2.msra.mxu0 0.0
    %424 = vmatprep.subr.mxu0 0.0
    %425 = vmatpush2.msra.mxu0 0.0
    %426 = vmatprep.mubr.f32.mxu0 0.0
    %427 = vmatmul.mubr.f32.gmra.mxu0 %v360
    %v428 = vpop.f32.mrf.mxu0
    %v429 = vadd.f32 0.0, %v428
    %v430 = vpop.f32.mrf.mxu0
    %431 = vdwg.mxu0
    %v432 = vpack.c.bf16 %v429, %v429
    %v433 = vpack.c.bf16 %v104, %v103
    %v434 = vpack.c.bf16 %v106, %v105
    %v435 = vpack.c.bf16 %v108, %v107
    %v436 = vpack.c.bf16 %v110, %v109
    %v437 = vpack.c.bf16 %v112, %v111
    %v438 = vpack.c.bf16 %v114, %v113
    %v439 = vpack.c.bf16 %v116, %v115
    %v440 = vpack.c.bf16 %v118, %v117
    %v442 = vlaneseq
    %v443 = vshrl.u32 %v442, 7
    %v444 = vsub.s32 0, %v443
    %v445 = vrot.slane %v119, %v444
    %447 = vmatprep.subr.bf16.mxu0 0
    %448 = vmatpush1.bf16.msra.mxu0 %v440
    %449 = vmatprep.subr.bf16.mxu0 0
    %450 = vmatpush1.bf16.msra.mxu0 %v439
    %451 = vmatprep.subr.bf16.mxu0 0
    %452 = vmatpush1.bf16.msra.mxu0 %v438
    %453 = vmatprep.subr.bf16.mxu0 0
    %454 = vmatpush1.bf16.msra.mxu0 %v437
    %455 = vmatprep.subr.bf16.mxu0 0
    %456 = vmatpush1.bf16.msra.mxu0 %v436
    %457 = vmatprep.subr.bf16.mxu0 0
    %458 = vmatpush1.bf16.msra.mxu0 %v435
    %459 = vmatprep.subr.bf16.mxu0 0
    %460 = vmatpush1.bf16.msra.mxu0 %v434
    %461 = vmatprep.subr.bf16.mxu0 0
    %462 = vmatpush1.bf16.msra.mxu0 %v433
    %463 = vmatprep.subr.bf16.mxu0 0
    %464 = vmatpush2.bf16.msra.mxu0 0
    %465 = vmatprep.subr.bf16.mxu0 0
    %466 = vmatpush2.bf16.msra.mxu0 0
    %467 = vmatprep.subr.bf16.mxu0 0
    %468 = vmatpush2.bf16.msra.mxu0 0
    %469 = vmatprep.subr.bf16.mxu0 0
    %470 = vmatpush2.bf16.msra.mxu0 0
    %471 = vmatprep.subr.bf16.mxu0 0
    %472 = vmatpush2.bf16.msra.mxu0 0
    %473 = vmatprep.subr.bf16.mxu0 0
    %474 = vmatpush2.bf16.msra.mxu0 0
    %475 = vmatprep.subr.bf16.mxu0 0
    %476 = vmatpush2.bf16.msra.mxu0 0
    %477 = vmatprep.subr.bf16.mxu0 0
    %478 = vmatpush2.bf16.msra.mxu0 0
    %479 = vmatprep.mubr.bf16.mxu0 0
    %480 = vmatmul.mubr.bf16.gmra.mxu0 %v432
    %v481 = vpop.f32.mrf.mxu0
    %v482 = vadd.f32 %v445, %v481
    %v483 = vpop.f32.mrf.mxu0
    %v484 = vpop.f32.mrf.mxu0
    %v485 = vpop.f32.mrf.mxu0
    %486 = vdwg.mxu0
    %v487 = vmax.f32 %v482, 0.0
    %v488 = vld [vmem:[%s3] sm:$0xff]
    %v489 = vld [vmem:[%s4] sm:$0xff]
    %v490 = vcvt.s32.f32 %v489
    %v491 = vmax.f32 %v490, 1.0
    %v492 = vrcp.pop %v491
    %493 = vset.pattern.permute.xlu0 0
    %494 = vperm.xlu0 %493, %v489
    %v495 = vpop.permute.xlu0 %494
    %vm496 = vcmp.lt.s32.totalorder %v126, %v495
    %498 = vset.pattern.permute.xlu0 0
    %499 = vperm.xlu0 %498, %v492
    %v500 = vpop.permute.xlu0 %499
    %v502 = vsel %vm496, %v500, 0.0
    %v503 = vlaneseq
    %v504 = vshrl.u32 %v503, 7
    %v505 = vsub.s32 0, %v504
    %v506 = vrot.slane %v488, %v505
    %508 = vbcast.lane.b32.xlu0 %v506, 256
    %v509 = vpop.permute.xlu0 %508
    %v510 = vlaneseq
    %v511 = vshrl.u32 %v510, 7
    %v512 = vsub.s32 1, %v511
    %v513 = vrot.slane %v488, %v512
    %515 = vbcast.lane.b32.xlu0 %v513, 256
    %v516 = vpop.permute.xlu0 %515
    %v517 = vlaneseq
    %v518 = vshrl.u32 %v517, 7
    %v519 = vsub.s32 2, %v518
    %v520 = vrot.slane %v488, %v519
    %522 = vbcast.lane.b32.xlu0 %v520, 256
    %v523 = vpop.permute.xlu0 %522
    %v524 = vlaneseq
    %v525 = vshrl.u32 %v524, 7
    %v526 = vsub.s32 3, %v525
    %v527 = vrot.slane %v488, %v526
    %529 = vbcast.lane.b32.xlu0 %v527, 256
    %v530 = vpop.permute.xlu0 %529
    %v531 = vlaneseq
    %v532 = vshrl.u32 %v531, 7
    %v533 = vsub.s32 4, %v532
    %v534 = vrot.slane %v488, %v533
    %536 = vbcast.lane.b32.xlu0 %v534, 256
    %v537 = vpop.permute.xlu0 %536
    %v538 = vlaneseq
    %v539 = vshrl.u32 %v538, 7
    %v540 = vsub.s32 5, %v539
    %v541 = vrot.slane %v488, %v540
    %543 = vbcast.lane.b32.xlu0 %v541, 256
    %v544 = vpop.permute.xlu0 %543
    %v545 = vlaneseq
    %v546 = vshrl.u32 %v545, 7
    %v547 = vsub.s32 6, %v546
    %v548 = vrot.slane %v488, %v547
    %550 = vbcast.lane.b32.xlu0 %v548, 256
    %v551 = vpop.permute.xlu0 %550
    %v552 = vlaneseq
    %v553 = vshrl.u32 %v552, 7
    %v554 = vsub.s32 7, %v553
    %v555 = vrot.slane %v488, %v554
    %557 = vbcast.lane.b32.xlu0 %v555, 256
    %v558 = vpop.permute.xlu0 %557
    %vm559 = vcmp.eq.s32.totalorder %v509, %v126
    %vm560 = vcmp.eq.s32.totalorder %v516, %v126
    %vm561 = vcmp.eq.s32.totalorder %v523, %v126
    %vm562 = vcmp.eq.s32.totalorder %v530, %v126
    %vm563 = vcmp.eq.s32.totalorder %v537, %v126
    %vm564 = vcmp.eq.s32.totalorder %v544, %v126
    %vm565 = vcmp.eq.s32.totalorder %v551, %v126
    %vm566 = vcmp.eq.s32.totalorder %v558, %v126
    %v567 = vsel %vm559, 1, 0
    %v568 = vsel %vm560, 1, 0
    %v569 = vsel %vm561, 1, 0
    %v570 = vsel %vm562, 1, 0
    %v571 = vsel %vm563, 1, 0
    %v572 = vsel %vm564, 1, 0
    %v573 = vsel %vm565, 1, 0
    %v574 = vsel %vm566, 1, 0
    %v575 = vcvt.s32.f32 %v567
    %v576 = vcvt.s32.f32 %v568
    %v577 = vcvt.s32.f32 %v569
    %v578 = vcvt.s32.f32 %v570
    %v579 = vcvt.s32.f32 %v571
    %v580 = vcvt.s32.f32 %v572
    %v581 = vcvt.s32.f32 %v573
    %v582 = vcvt.s32.f32 %v574
    %v583 = vlaneseq
    %v584 = vshrl.u32 %v583, 7
    %v585 = vsub.s32 0, %v584
    %v586 = vrot.slane %v502, %v585
    %588 = vbcast.lane.b32.xlu0 %v586, 256
    %v589 = vpop.permute.xlu0 %588
    %v590 = vlaneseq
    %v591 = vshrl.u32 %v590, 7
    %v592 = vsub.s32 1, %v591
    %v593 = vrot.slane %v502, %v592
    %595 = vbcast.lane.b32.xlu0 %v593, 256
    %v596 = vpop.permute.xlu0 %595
    %v597 = vlaneseq
    %v598 = vshrl.u32 %v597, 7
    %v599 = vsub.s32 2, %v598
    %v600 = vrot.slane %v502, %v599
    %602 = vbcast.lane.b32.xlu0 %v600, 256
    %v603 = vpop.permute.xlu0 %602
    %v604 = vlaneseq
    %v605 = vshrl.u32 %v604, 7
    %v606 = vsub.s32 3, %v605
    %v607 = vrot.slane %v502, %v606
    %609 = vbcast.lane.b32.xlu0 %v607, 256
    %v610 = vpop.permute.xlu0 %609
    %v611 = vlaneseq
    %v612 = vshrl.u32 %v611, 7
    %v613 = vsub.s32 4, %v612
    %v614 = vrot.slane %v502, %v613
    %616 = vbcast.lane.b32.xlu0 %v614, 256
    %v617 = vpop.permute.xlu0 %616
    %v618 = vlaneseq
    %v619 = vshrl.u32 %v618, 7
    %v620 = vsub.s32 5, %v619
    %v621 = vrot.slane %v502, %v620
    %623 = vbcast.lane.b32.xlu0 %v621, 256
    %v624 = vpop.permute.xlu0 %623
    %v625 = vlaneseq
    %v626 = vshrl.u32 %v625, 7
    %v627 = vsub.s32 6, %v626
    %v628 = vrot.slane %v502, %v627
    %630 = vbcast.lane.b32.xlu0 %v628, 256
    %v631 = vpop.permute.xlu0 %630
    %v632 = vlaneseq
    %v633 = vshrl.u32 %v632, 7
    %v634 = vsub.s32 7, %v633
    %v635 = vrot.slane %v502, %v634
    %637 = vbcast.lane.b32.xlu0 %v635, 256
    %v638 = vpop.permute.xlu0 %637
    %v639 = vmul.f32 %v575, %v589
    %v640 = vmul.f32 %v576, %v596
    %v641 = vmul.f32 %v577, %v603
    %v642 = vmul.f32 %v578, %v610
    %v643 = vmul.f32 %v579, %v617
    %v644 = vmul.f32 %v580, %v624
    %v645 = vmul.f32 %v581, %v631
    %v646 = vmul.f32 %v582, %v638
    %v647 = vsel %vm281, %v639, 0.0
    %v648 = vrot.slane %v647, 4
    %v649 = vadd.f32 %v647, %v648
    %v650 = vrot.slane %v649, 2
    %v651 = vadd.f32 %v649, %v650
    %v652 = vrot.slane %v651, 1
    %v653 = vadd.f32 %v651, %v652
    %v654 = vsel %vm281, %v640, 0.0
    %v655 = vrot.slane %v654, 4
    %v656 = vadd.f32 %v654, %v655
    %v657 = vrot.slane %v656, 2
    %v658 = vadd.f32 %v656, %v657
    %v659 = vrot.slane %v658, 1
    %v660 = vadd.f32 %v658, %v659
    %v661 = vsel %vm281, %v641, 0.0
    %v662 = vrot.slane %v661, 4
    %v663 = vadd.f32 %v661, %v662
    %v664 = vrot.slane %v663, 2
    %v665 = vadd.f32 %v663, %v664
    %v666 = vrot.slane %v665, 1
    %v667 = vadd.f32 %v665, %v666
    %v668 = vsel %vm281, %v642, 0.0
    %v669 = vrot.slane %v668, 4
    %v670 = vadd.f32 %v668, %v669
    %v671 = vrot.slane %v670, 2
    %v672 = vadd.f32 %v670, %v671
    %v673 = vrot.slane %v672, 1
    %v674 = vadd.f32 %v672, %v673
    %v675 = vsel %vm281, %v643, 0.0
    %v676 = vrot.slane %v675, 4
    %v677 = vadd.f32 %v675, %v676
    %v678 = vrot.slane %v677, 2
    %v679 = vadd.f32 %v677, %v678
    %v680 = vrot.slane %v679, 1
    %v681 = vadd.f32 %v679, %v680
    %v682 = vsel %vm281, %v644, 0.0
    %v683 = vrot.slane %v682, 4
    %v684 = vadd.f32 %v682, %v683
    %v685 = vrot.slane %v684, 2
    %v686 = vadd.f32 %v684, %v685
    %v687 = vrot.slane %v686, 1
    %v688 = vadd.f32 %v686, %v687
    %v689 = vsel %vm281, %v645, 0.0
    %v690 = vrot.slane %v689, 4
    %v691 = vadd.f32 %v689, %v690
    %v692 = vrot.slane %v691, 2
    %v693 = vadd.f32 %v691, %v692
    %v694 = vrot.slane %v693, 1
    %v695 = vadd.f32 %v693, %v694
    %v696 = vsel %vm281, %v646, 0.0
    %v697 = vrot.slane %v696, 4
    %v698 = vadd.f32 %v696, %v697
    %v699 = vrot.slane %v698, 2
    %v700 = vadd.f32 %v698, %v699
    %v701 = vrot.slane %v700, 1
    %v702 = vadd.f32 %v700, %v701
    %v711 = vsel %vm346, %v660, %v653
    %v712 = vsel %vm348, %v667, %v711
    %v713 = vsel %vm350, %v674, %v712
    %v714 = vsel %vm352, %v681, %v713
    %v715 = vsel %vm354, %v688, %v714
    %v716 = vsel %vm356, %v695, %v715
    %v717 = vsel %vm358, %v702, %v716
    %v718 = vsel %vm281, %v717, 0
    %720 = vmatprep.subr.mxu0 0.0
    %721 = vmatpush1.msra.mxu0 0.0
    %722 = vmatprep.subr.mxu0 0.0
    %723 = vmatpush1.msra.mxu0 0.0
    %724 = vmatprep.subr.mxu0 0.0
    %725 = vmatpush1.msra.mxu0 0.0
    %726 = vmatprep.subr.mxu0 0.0
    %727 = vmatpush1.msra.mxu0 0.0
    %728 = vmatprep.subr.mxu0 0.0
    %729 = vmatpush1.msra.mxu0 0.0
    %730 = vmatprep.subr.mxu0 0.0
    %731 = vmatpush1.msra.mxu0 0.0
    %732 = vmatprep.subr.mxu0 0.0
    %733 = vmatpush1.msra.mxu0 0.0
    %734 = vmatprep.subr.mxu0 0.0
    %735 = vmatpush1.msra.mxu0 0.0
    %736 = vmatprep.subr.mxu0 0.0
    %737 = vmatpush1.msra.mxu0 %v102
    %738 = vmatprep.subr.mxu0 0.0
    %739 = vmatpush1.msra.mxu0 %v101
    %740 = vmatprep.subr.mxu0 0.0
    %741 = vmatpush1.msra.mxu0 %v100
    %742 = vmatprep.subr.mxu0 0.0
    %743 = vmatpush1.msra.mxu0 %v99
    %744 = vmatprep.subr.mxu0 0.0
    %745 = vmatpush1.msra.mxu0 %v98
    %746 = vmatprep.subr.mxu0 0.0
    %747 = vmatpush1.msra.mxu0 %v97
    %748 = vmatprep.subr.mxu0 0.0
    %749 = vmatpush1.msra.mxu0 %v96
    %750 = vmatprep.subr.mxu0 0.0
    %751 = vmatpush1.msra.mxu0 %v95
    %752 = vmatprep.subr.mxu0 0.0
    %753 = vmatpush2.msra.mxu0 0.0
    %754 = vmatprep.subr.mxu0 0.0
    %755 = vmatpush2.msra.mxu0 0.0
    %756 = vmatprep.subr.mxu0 0.0
    %757 = vmatpush2.msra.mxu0 0.0
    %758 = vmatprep.subr.mxu0 0.0
    %759 = vmatpush2.msra.mxu0 0.0
    %760 = vmatprep.subr.mxu0 0.0
    %761 = vmatpush2.msra.mxu0 0.0
    %762 = vmatprep.subr.mxu0 0.0
    %763 = vmatpush2.msra.mxu0 0.0
    %764 = vmatprep.subr.mxu0 0.0
    %765 = vmatpush2.msra.mxu0 0.0
    %766 = vmatprep.subr.mxu0 0.0
    %767 = vmatpush2.msra.mxu0 0.0
    %768 = vmatprep.subr.mxu0 0.0
    %769 = vmatpush2.msra.mxu0 0.0
    %770 = vmatprep.subr.mxu0 0.0
    %771 = vmatpush2.msra.mxu0 0.0
    %772 = vmatprep.subr.mxu0 0.0
    %773 = vmatpush2.msra.mxu0 0.0
    %774 = vmatprep.subr.mxu0 0.0
    %775 = vmatpush2.msra.mxu0 0.0
    %776 = vmatprep.subr.mxu0 0.0
    %777 = vmatpush2.msra.mxu0 0.0
    %778 = vmatprep.subr.mxu0 0.0
    %779 = vmatpush2.msra.mxu0 0.0
    %780 = vmatprep.subr.mxu0 0.0
    %781 = vmatpush2.msra.mxu0 0.0
    %782 = vmatprep.subr.mxu0 0.0
    %783 = vmatpush2.msra.mxu0 0.0
    %784 = vmatprep.mubr.f32.mxu0 0.0
    %785 = vmatmul.mubr.f32.gmra.mxu0 %v718
    %v786 = vpop.f32.mrf.mxu0
    %v787 = vadd.f32 0.0, %v786
    %v788 = vpop.f32.mrf.mxu0
    %789 = vdwg.mxu0
    %v790 = vpack.c.bf16 %v787, %v787
    %791 = vmatprep.subr.bf16.mxu0 0
    %792 = vmatpush1.bf16.msra.mxu0 %v440
    %793 = vmatprep.subr.bf16.mxu0 0
    %794 = vmatpush1.bf16.msra.mxu0 %v439
    %795 = vmatprep.subr.bf16.mxu0 0
    %796 = vmatpush1.bf16.msra.mxu0 %v438
    %797 = vmatprep.subr.bf16.mxu0 0
    %798 = vmatpush1.bf16.msra.mxu0 %v437
    %799 = vmatprep.subr.bf16.mxu0 0
    %800 = vmatpush1.bf16.msra.mxu0 %v436
    %801 = vmatprep.subr.bf16.mxu0 0
    %802 = vmatpush1.bf16.msra.mxu0 %v435
    %803 = vmatprep.subr.bf16.mxu0 0
    %804 = vmatpush1.bf16.msra.mxu0 %v434
    %805 = vmatprep.subr.bf16.mxu0 0
    %806 = vmatpush1.bf16.msra.mxu0 %v433
    %807 = vmatprep.subr.bf16.mxu0 0
    %808 = vmatpush2.bf16.msra.mxu0 0
    %809 = vmatprep.subr.bf16.mxu0 0
    %810 = vmatpush2.bf16.msra.mxu0 0
    %811 = vmatprep.subr.bf16.mxu0 0
    %812 = vmatpush2.bf16.msra.mxu0 0
    %813 = vmatprep.subr.bf16.mxu0 0
    %814 = vmatpush2.bf16.msra.mxu0 0
    %815 = vmatprep.subr.bf16.mxu0 0
    %816 = vmatpush2.bf16.msra.mxu0 0
    %817 = vmatprep.subr.bf16.mxu0 0
    %818 = vmatpush2.bf16.msra.mxu0 0
    %819 = vmatprep.subr.bf16.mxu0 0
    %820 = vmatpush2.bf16.msra.mxu0 0
    %821 = vmatprep.subr.bf16.mxu0 0
    %822 = vmatpush2.bf16.msra.mxu0 0
    %823 = vmatprep.mubr.bf16.mxu0 0
    %824 = vmatmul.mubr.bf16.gmra.mxu0 %v790
    %v825 = vpop.f32.mrf.mxu0
    %v826 = vadd.f32 %v445, %v825
    %v827 = vpop.f32.mrf.mxu0
    %v828 = vpop.f32.mrf.mxu0
    %v829 = vpop.f32.mrf.mxu0
    %830 = vdwg.mxu0
    %v831 = vmax.f32 %v826, 0.0
    %v832 = vld [vmem:[#allocation7] sm:$0xff]
    %v833 = vld [vmem:[#allocation7 + $0x8] sm:$0xff]
    %v834 = vld [vmem:[#allocation7 + $0x10] sm:$0xff]
    %v835 = vld [vmem:[#allocation7 + $0x18] sm:$0xff]
    %v836 = vld [vmem:[#allocation7 + $0x20] sm:$0xff]
    %v837 = vld [vmem:[#allocation7 + $0x28] sm:$0xff]
    %v838 = vld [vmem:[#allocation7 + $0x30] sm:$0xff]
    %v839 = vld [vmem:[#allocation7 + $0x38] sm:$0xff]
    %v840 = vld [vmem:[#allocation7 + $0x40] sm:$0xff]
    %v841 = vld [vmem:[#allocation7 + $0x48] sm:$0xff]
    %v842 = vld [vmem:[#allocation7 + $0x50] sm:$0xff]
    %v843 = vld [vmem:[#allocation7 + $0x58] sm:$0xff]
    %v844 = vld [vmem:[#allocation7 + $0x60] sm:$0xff]
    %v845 = vld [vmem:[#allocation7 + $0x68] sm:$0xff]
    %v846 = vld [vmem:[#allocation7 + $0x70] sm:$0xff]
    %v847 = vld [vmem:[#allocation7 + $0x78] sm:$0xff]
    %v848 = vpack.c.bf16 %v487, %v487
    %v849 = vpack.c.bf16 %v833, %v832
    %v850 = vpack.c.bf16 %v835, %v834
    %v851 = vpack.c.bf16 %v837, %v836
    %v852 = vpack.c.bf16 %v839, %v838
    %v853 = vpack.c.bf16 %v841, %v840
    %v854 = vpack.c.bf16 %v843, %v842
    %v855 = vpack.c.bf16 %v845, %v844
    %v856 = vpack.c.bf16 %v847, %v846
    %v857 = vld [vmem:[#allocation7 + $0x80] sm:$0xff]
    %v858 = vld [vmem:[#allocation7 + $0x88] sm:$0xff]
    %v859 = vld [vmem:[#allocation7 + $0x90] sm:$0xff]
    %v860 = vld [vmem:[#allocation7 + $0x98] sm:$0xff]
    %v861 = vld [vmem:[#allocation7 + $0xa0] sm:$0xff]
    %v862 = vld [vmem:[#allocation7 + $0xa8] sm:$0xff]
    %v863 = vld [vmem:[#allocation7 + $0xb0] sm:$0xff]
    %v864 = vld [vmem:[#allocation7 + $0xb8] sm:$0xff]
    %v865 = vld [vmem:[#allocation7 + $0xc0] sm:$0xff]
    %v866 = vld [vmem:[#allocation7 + $0xc8] sm:$0xff]
    %v867 = vld [vmem:[#allocation7 + $0xd0] sm:$0xff]
    %v868 = vld [vmem:[#allocation7 + $0xd8] sm:$0xff]
    %v869 = vld [vmem:[#allocation7 + $0xe0] sm:$0xff]
    %v870 = vld [vmem:[#allocation7 + $0xe8] sm:$0xff]
    %v871 = vld [vmem:[#allocation7 + $0xf0] sm:$0xff]
    %v872 = vld [vmem:[#allocation7 + $0xf8] sm:$0xff]
    %v873 = vpack.c.bf16 %v831, %v831
    %v874 = vpack.c.bf16 %v858, %v857
    %v875 = vpack.c.bf16 %v860, %v859
    %v876 = vpack.c.bf16 %v862, %v861
    %v877 = vpack.c.bf16 %v864, %v863
    %v878 = vpack.c.bf16 %v866, %v865
    %v879 = vpack.c.bf16 %v868, %v867
    %v880 = vpack.c.bf16 %v870, %v869
    %v881 = vpack.c.bf16 %v872, %v871
    %882 = vmatprep.subr.bf16.mxu0 0
    %883 = vmatpush1.bf16.msra.mxu0 %v881
    %884 = vmatprep.subr.bf16.mxu0 0
    %885 = vmatpush1.bf16.msra.mxu0 %v880
    %886 = vmatprep.subr.bf16.mxu0 0
    %887 = vmatpush1.bf16.msra.mxu0 %v879
    %888 = vmatprep.subr.bf16.mxu0 0
    %889 = vmatpush1.bf16.msra.mxu0 %v878
    %890 = vmatprep.subr.bf16.mxu0 0
    %891 = vmatpush1.bf16.msra.mxu0 %v877
    %892 = vmatprep.subr.bf16.mxu0 0
    %893 = vmatpush1.bf16.msra.mxu0 %v876
    %894 = vmatprep.subr.bf16.mxu0 0
    %895 = vmatpush1.bf16.msra.mxu0 %v875
    %896 = vmatprep.subr.bf16.mxu0 0
    %897 = vmatpush1.bf16.msra.mxu0 %v874
    %898 = vmatprep.subr.bf16.mxu0 0
    %899 = vmatpush2.bf16.msra.mxu0 0
    %900 = vmatprep.subr.bf16.mxu0 0
    %901 = vmatpush2.bf16.msra.mxu0 0
    %902 = vmatprep.subr.bf16.mxu0 0
    %903 = vmatpush2.bf16.msra.mxu0 0
    %904 = vmatprep.subr.bf16.mxu0 0
    %905 = vmatpush2.bf16.msra.mxu0 0
    %906 = vmatprep.subr.bf16.mxu0 0
    %907 = vmatpush2.bf16.msra.mxu0 0
    %908 = vmatprep.subr.bf16.mxu0 0
    %909 = vmatpush2.bf16.msra.mxu0 0
    %910 = vmatprep.subr.bf16.mxu0 0
    %911 = vmatpush2.bf16.msra.mxu0 0
    %912 = vmatprep.subr.bf16.mxu0 0
    %913 = vmatpush2.bf16.msra.mxu0 0
    %914 = vmatprep.mubr.bf16.mxu0 0
    %915 = vmatmul.mubr.bf16.gmra.mxu0 %v873
    %v916 = vpop.f32.mrf.mxu0
    %v917 = vadd.f32 0.0, %v916
    %v918 = vpop.f32.mrf.mxu0
    %v919 = vpop.f32.mrf.mxu0
    %v920 = vpop.f32.mrf.mxu0
    %921 = vdwg.mxu0
    %922 = vmatprep.subr.bf16.mxu0 0
    %923 = vmatpush1.bf16.msra.mxu0 %v856
    %924 = vmatprep.subr.bf16.mxu0 0
    %925 = vmatpush1.bf16.msra.mxu0 %v855
    %926 = vmatprep.subr.bf16.mxu0 0
    %927 = vmatpush1.bf16.msra.mxu0 %v854
    %928 = vmatprep.subr.bf16.mxu0 0
    %929 = vmatpush1.bf16.msra.mxu0 %v853
    %930 = vmatprep.subr.bf16.mxu0 0
    %931 = vmatpush1.bf16.msra.mxu0 %v852
    %932 = vmatprep.subr.bf16.mxu0 0
    %933 = vmatpush1.bf16.msra.mxu0 %v851
    %934 = vmatprep.subr.bf16.mxu0 0
    %935 = vmatpush1.bf16.msra.mxu0 %v850
    %936 = vmatprep.subr.bf16.mxu0 0
    %937 = vmatpush1.bf16.msra.mxu0 %v849
    %938 = vmatprep.subr.bf16.mxu0 0
    %939 = vmatpush2.bf16.msra.mxu0 0
    %940 = vmatprep.subr.bf16.mxu0 0
    %941 = vmatpush2.bf16.msra.mxu0 0
    %942 = vmatprep.subr.bf16.mxu0 0
    %943 = vmatpush2.bf16.msra.mxu0 0
    %944 = vmatprep.subr.bf16.mxu0 0
    %945 = vmatpush2.bf16.msra.mxu0 0
    %946 = vmatprep.subr.bf16.mxu0 0
    %947 = vmatpush2.bf16.msra.mxu0 0
    %948 = vmatprep.subr.bf16.mxu0 0
    %949 = vmatpush2.bf16.msra.mxu0 0
    %950 = vmatprep.subr.bf16.mxu0 0
    %951 = vmatpush2.bf16.msra.mxu0 0
    %952 = vmatprep.subr.bf16.mxu0 0
    %953 = vmatpush2.bf16.msra.mxu0 0
    %954 = vmatprep.mubr.bf16.mxu0 0
    %955 = vmatmul.mubr.bf16.gmra.mxu0 %v848
    %v956 = vpop.f32.mrf.mxu0
    %v957 = vadd.f32 %v917, %v956
    %v958 = vpop.f32.mrf.mxu0
    %v959 = vpop.f32.mrf.mxu0
    %v960 = vpop.f32.mrf.mxu0
    %961 = vdwg.mxu0
    %v962 = vsub.f32 %v487, %v831
    %v963 = vand.u32 2147483647, %v962
    %v964 = vld [vmem:[#allocation7 + $0x100] sm:$0xff]
    %v965 = vld [vmem:[#allocation7 + $0x108] sm:$0xff]
    %v966 = vld [vmem:[#allocation7 + $0x110] sm:$0xff]
    %v967 = vld [vmem:[#allocation7 + $0x118] sm:$0xff]
    %v968 = vld [vmem:[#allocation7 + $0x120] sm:$0xff]
    %v969 = vld [vmem:[#allocation7 + $0x128] sm:$0xff]
    %v970 = vld [vmem:[#allocation7 + $0x130] sm:$0xff]
    %v971 = vld [vmem:[#allocation7 + $0x138] sm:$0xff]
    %v972 = vld [vmem:[#allocation7 + $0x140] sm:$0xff]
    %v973 = vld [vmem:[#allocation7 + $0x148] sm:$0xff]
    %v974 = vld [vmem:[#allocation7 + $0x150] sm:$0xff]
    %v975 = vld [vmem:[#allocation7 + $0x158] sm:$0xff]
    %v976 = vld [vmem:[#allocation7 + $0x160] sm:$0xff]
    %v977 = vld [vmem:[#allocation7 + $0x168] sm:$0xff]
    %v978 = vld [vmem:[#allocation7 + $0x170] sm:$0xff]
    %v979 = vld [vmem:[#allocation7 + $0x178] sm:$0xff]
    %v980 = vpack.c.bf16 %v963, %v963
    %v981 = vpack.c.bf16 %v965, %v964
    %v982 = vpack.c.bf16 %v967, %v966
    %v983 = vpack.c.bf16 %v969, %v968
    %v984 = vpack.c.bf16 %v971, %v970
    %v985 = vpack.c.bf16 %v973, %v972
    %v986 = vpack.c.bf16 %v975, %v974
    %v987 = vpack.c.bf16 %v977, %v976
    %v988 = vpack.c.bf16 %v979, %v978
    %989 = vmatprep.subr.bf16.mxu0 0
    %990 = vmatpush1.bf16.msra.mxu0 %v988
    %991 = vmatprep.subr.bf16.mxu0 0
    %992 = vmatpush1.bf16.msra.mxu0 %v987
    %993 = vmatprep.subr.bf16.mxu0 0
    %994 = vmatpush1.bf16.msra.mxu0 %v986
    %995 = vmatprep.subr.bf16.mxu0 0
    %996 = vmatpush1.bf16.msra.mxu0 %v985
    %997 = vmatprep.subr.bf16.mxu0 0
    %998 = vmatpush1.bf16.msra.mxu0 %v984
    %999 = vmatprep.subr.bf16.mxu0 0
    %1000 = vmatpush1.bf16.msra.mxu0 %v983
    %1001 = vmatprep.subr.bf16.mxu0 0
    %1002 = vmatpush1.bf16.msra.mxu0 %v982
    %1003 = vmatprep.subr.bf16.mxu0 0
    %1004 = vmatpush1.bf16.msra.mxu0 %v981
    %1005 = vmatprep.subr.bf16.mxu0 0
    %1006 = vmatpush2.bf16.msra.mxu0 0
    %1007 = vmatprep.subr.bf16.mxu0 0
    %1008 = vmatpush2.bf16.msra.mxu0 0
    %1009 = vmatprep.subr.bf16.mxu0 0
    %1010 = vmatpush2.bf16.msra.mxu0 0
    %1011 = vmatprep.subr.bf16.mxu0 0
    %1012 = vmatpush2.bf16.msra.mxu0 0
    %1013 = vmatprep.subr.bf16.mxu0 0
    %1014 = vmatpush2.bf16.msra.mxu0 0
    %1015 = vmatprep.subr.bf16.mxu0 0
    %1016 = vmatpush2.bf16.msra.mxu0 0
    %1017 = vmatprep.subr.bf16.mxu0 0
    %1018 = vmatpush2.bf16.msra.mxu0 0
    %1019 = vmatprep.subr.bf16.mxu0 0
    %1020 = vmatpush2.bf16.msra.mxu0 0
    %1021 = vmatprep.mubr.bf16.mxu0 0
    %1022 = vmatmul.mubr.bf16.gmra.mxu0 %v980
    %v1023 = vpop.f32.mrf.mxu0
    %v1024 = vadd.f32 0.0, %v1023
    %v1025 = vpop.f32.mrf.mxu0
    %v1026 = vpop.f32.mrf.mxu0
    %v1027 = vpop.f32.mrf.mxu0
    %1028 = vdwg.mxu0
    %v1029 = vadd.f32 %v957, %v1024
    %v1030 = vmul.f32 %v487, %v831
    %v1031 = vld [vmem:[#allocation7 + $0x180] sm:$0xff]
    %v1032 = vld [vmem:[#allocation7 + $0x188] sm:$0xff]
    %v1033 = vld [vmem:[#allocation7 + $0x190] sm:$0xff]
    %v1034 = vld [vmem:[#allocation7 + $0x198] sm:$0xff]
    %v1035 = vld [vmem:[#allocation7 + $0x1a0] sm:$0xff]
    %v1036 = vld [vmem:[#allocation7 + $0x1a8] sm:$0xff]
    %v1037 = vld [vmem:[#allocation7 + $0x1b0] sm:$0xff]
    %v1038 = vld [vmem:[#allocation7 + $0x1b8] sm:$0xff]
    %v1039 = vld [vmem:[#allocation7 + $0x1c0] sm:$0xff]
    %v1040 = vld [vmem:[#allocation7 + $0x1c8] sm:$0xff]
    %v1041 = vld [vmem:[#allocation7 + $0x1d0] sm:$0xff]
    %v1042 = vld [vmem:[#allocation7 + $0x1d8] sm:$0xff]
    %v1043 = vld [vmem:[#allocation7 + $0x1e0] sm:$0xff]
    %v1044 = vld [vmem:[#allocation7 + $0x1e8] sm:$0xff]
    %v1045 = vld [vmem:[#allocation7 + $0x1f0] sm:$0xff]
    %v1046 = vld [vmem:[#allocation7 + $0x1f8] sm:$0xff]
    %v1047 = vpack.c.bf16 %v1030, %v1030
    %v1048 = vpack.c.bf16 %v1032, %v1031
    %v1049 = vpack.c.bf16 %v1034, %v1033
    %v1050 = vpack.c.bf16 %v1036, %v1035
    %v1051 = vpack.c.bf16 %v1038, %v1037
    %v1052 = vpack.c.bf16 %v1040, %v1039
    %v1053 = vpack.c.bf16 %v1042, %v1041
    %v1054 = vpack.c.bf16 %v1044, %v1043
    %v1055 = vpack.c.bf16 %v1046, %v1045
    %1056 = vmatprep.subr.bf16.mxu0 0
    %1057 = vmatpush1.bf16.msra.mxu0 %v1055
    %1058 = vmatprep.subr.bf16.mxu0 0
    %1059 = vmatpush1.bf16.msra.mxu0 %v1054
    %1060 = vmatprep.subr.bf16.mxu0 0
    %1061 = vmatpush1.bf16.msra.mxu0 %v1053
    %1062 = vmatprep.subr.bf16.mxu0 0
    %1063 = vmatpush1.bf16.msra.mxu0 %v1052
    %1064 = vmatprep.subr.bf16.mxu0 0
    %1065 = vmatpush1.bf16.msra.mxu0 %v1051
    %1066 = vmatprep.subr.bf16.mxu0 0
    %1067 = vmatpush1.bf16.msra.mxu0 %v1050
    %1068 = vmatprep.subr.bf16.mxu0 0
    %1069 = vmatpush1.bf16.msra.mxu0 %v1049
    %1070 = vmatprep.subr.bf16.mxu0 0
    %1071 = vmatpush1.bf16.msra.mxu0 %v1048
    %1072 = vmatprep.subr.bf16.mxu0 0
    %1073 = vmatpush2.bf16.msra.mxu0 0
    %1074 = vmatprep.subr.bf16.mxu0 0
    %1075 = vmatpush2.bf16.msra.mxu0 0
    %1076 = vmatprep.subr.bf16.mxu0 0
    %1077 = vmatpush2.bf16.msra.mxu0 0
    %1078 = vmatprep.subr.bf16.mxu0 0
    %1079 = vmatpush2.bf16.msra.mxu0 0
    %1080 = vmatprep.subr.bf16.mxu0 0
    %1081 = vmatpush2.bf16.msra.mxu0 0
    %1082 = vmatprep.subr.bf16.mxu0 0
    %1083 = vmatpush2.bf16.msra.mxu0 0
    %1084 = vmatprep.subr.bf16.mxu0 0
    %1085 = vmatpush2.bf16.msra.mxu0 0
    %1086 = vmatprep.subr.bf16.mxu0 0
    %1087 = vmatpush2.bf16.msra.mxu0 0
    %1088 = vmatprep.mubr.bf16.mxu0 0
    %1089 = vmatmul.mubr.bf16.gmra.mxu0 %v1047
    %v1090 = vpop.f32.mrf.mxu0
    %v1091 = vadd.f32 0.0, %v1090
    %v1092 = vpop.f32.mrf.mxu0
    %v1093 = vpop.f32.mrf.mxu0
    %v1094 = vpop.f32.mrf.mxu0
    %1095 = vdwg.mxu0
    %v1096 = vadd.f32 %v1029, %v1091
    %v1097 = vld [vmem:[%s8] sm:$0x1]
    %v1099 = vlaneseq
    %v1100 = vshrl.u32 %v1099, 7
    %v1101 = vsub.s32 0, %v1100
    %v1102 = vrot.slane %v1097, %v1101
    %v1104 = vadd.f32 %v1096, %v1102
    %v1105 = vmax.f32 %v1104, 0.0
    %v1106 = vld [vmem:[#allocation8] sm:$0xff]
    %v1107 = vld [vmem:[#allocation8 + $0x8] sm:$0xff]
    %v1108 = vld [vmem:[#allocation8 + $0x10] sm:$0xff]
    %v1109 = vld [vmem:[#allocation8 + $0x18] sm:$0xff]
    %v1110 = vld [vmem:[#allocation8 + $0x20] sm:$0xff]
    %v1111 = vld [vmem:[#allocation8 + $0x28] sm:$0xff]
    %v1112 = vld [vmem:[#allocation8 + $0x30] sm:$0xff]
    %v1113 = vld [vmem:[#allocation8 + $0x38] sm:$0xff]
    %v1114 = vld [vmem:[#allocation8 + $0x40] sm:$0xff]
    %v1115 = vld [vmem:[#allocation8 + $0x48] sm:$0xff]
    %v1116 = vld [vmem:[#allocation8 + $0x50] sm:$0xff]
    %v1117 = vld [vmem:[#allocation8 + $0x58] sm:$0xff]
    %v1118 = vld [vmem:[#allocation8 + $0x60] sm:$0xff]
    %v1119 = vld [vmem:[#allocation8 + $0x68] sm:$0xff]
    %v1120 = vld [vmem:[#allocation8 + $0x70] sm:$0xff]
    %v1121 = vld [vmem:[#allocation8 + $0x78] sm:$0xff]
    %v1122 = vpack.c.bf16 %v1105, %v1105
    %v1123 = vpack.c.bf16 %v1107, %v1106
    %v1124 = vpack.c.bf16 %v1109, %v1108
    %v1125 = vpack.c.bf16 %v1111, %v1110
    %v1126 = vpack.c.bf16 %v1113, %v1112
    %v1127 = vpack.c.bf16 %v1115, %v1114
    %v1128 = vpack.c.bf16 %v1117, %v1116
    %v1129 = vpack.c.bf16 %v1119, %v1118
    %v1130 = vpack.c.bf16 %v1121, %v1120
    %v1131 = vld [vmem:[%s10] sm:$0x1]
    %v1133 = vlaneseq
    %v1134 = vshrl.u32 %v1133, 7
    %v1135 = vsub.s32 0, %v1134
    %v1136 = vrot.slane %v1131, %v1135
    %1138 = vmatprep.subr.bf16.mxu0 0
    %1139 = vmatpush1.bf16.msra.mxu0 %v1130
    %1140 = vmatprep.subr.bf16.mxu0 0
    %1141 = vmatpush1.bf16.msra.mxu0 %v1129
    %1142 = vmatprep.subr.bf16.mxu0 0
    %1143 = vmatpush1.bf16.msra.mxu0 %v1128
    %1144 = vmatprep.subr.bf16.mxu0 0
    %1145 = vmatpush1.bf16.msra.mxu0 %v1127
    %1146 = vmatprep.subr.bf16.mxu0 0
    %1147 = vmatpush1.bf16.msra.mxu0 %v1126
    %1148 = vmatprep.subr.bf16.mxu0 0
    %1149 = vmatpush1.bf16.msra.mxu0 %v1125
    %1150 = vmatprep.subr.bf16.mxu0 0
    %1151 = vmatpush1.bf16.msra.mxu0 %v1124
    %1152 = vmatprep.subr.bf16.mxu0 0
    %1153 = vmatpush1.bf16.msra.mxu0 %v1123
    %1154 = vmatprep.subr.bf16.mxu0 0
    %1155 = vmatpush2.bf16.msra.mxu0 0
    %1156 = vmatprep.subr.bf16.mxu0 0
    %1157 = vmatpush2.bf16.msra.mxu0 0
    %1158 = vmatprep.subr.bf16.mxu0 0
    %1159 = vmatpush2.bf16.msra.mxu0 0
    %1160 = vmatprep.subr.bf16.mxu0 0
    %1161 = vmatpush2.bf16.msra.mxu0 0
    %1162 = vmatprep.subr.bf16.mxu0 0
    %1163 = vmatpush2.bf16.msra.mxu0 0
    %1164 = vmatprep.subr.bf16.mxu0 0
    %1165 = vmatpush2.bf16.msra.mxu0 0
    %1166 = vmatprep.subr.bf16.mxu0 0
    %1167 = vmatpush2.bf16.msra.mxu0 0
    %1168 = vmatprep.subr.bf16.mxu0 0
    %1169 = vmatpush2.bf16.msra.mxu0 0
    %1170 = vmatprep.mubr.bf16.mxu0 0
    %1171 = vmatmul.mubr.bf16.gmra.mxu0 %v1122
    %v1172 = vpop.f32.mrf.mxu0
    %v1173 = vadd.f32 %v1136, %v1172
    %v1174 = vpop.f32.mrf.mxu0
    %v1175 = vpop.f32.mrf.mxu0
    %v1176 = vpop.f32.mrf.mxu0
    %1177 = vdwg.mxu0
    %1178 = vst [vmem:[#allocation10] sm:$0xff] %v1173
    // Predicated region
    $region62: #{tpu_custom_call.1} parent=1 // pred_check
      _
    $region63: #{tpu_custom_call.1} parent=1 // pred_check_branch
      %1180 = sbr.rel (0) target = $region65
    $region64: #{tpu_custom_call.1} parent=1 // pred_region
      %s1182 = ssub.s32 128, 128
      %1183 = vsyncadd [#allocation4], %s1182
      %s1185 = sshll.u32 [#allocation10], 4
      %s1186 = int_to_ptr.vmem [resolvable:$true] %s1185
      %1188 = dma.vmem_to_hbm [thread:$0]  %s1186, 128, %s11, [#allocation4]
    $region65: #{tpu_custom_call.1} parent=1 // pred_fallthru
      _
    // Predicated region
    $region66: #{tpu_custom_call.1} parent=1 // pred_check
      _
    $region67: #{tpu_custom_call.1} parent=1 // pred_check_branch
      %1190 = sbr.rel (0) target = $region69
    $region68: #{tpu_custom_call.1} parent=1 // pred_region
      %1191 = dma.done [#allocation4], 128
    $region69: #{tpu_custom_call.1} parent=1 // pred_fallthru
      _
    %1192 = vsyncpa [#allocation3], 1
    %1193 = vsyncpa [#allocation6], 1
    %1194 = vsyncpa [#allocation9], 1
    %1195 = vsyncpa [#allocation4], 1

</llo_original>
